<compile_context>
chip_gen: v7x
topology: tpu7x:2x2x1
jax: 0.10.0
libtpu: 0.0.40
codegen_flags: <defaults>
</compile_context>

<pallas_src>
import functools

import jax
import jax.numpy as jnp
from jax.experimental import pallas as pl
from jax.experimental.pallas import tpu as pltpu

LEAKY_RATE = 0.1


# ----------------------------------------------------------------------------
# Tiling helpers
# ----------------------------------------------------------------------------
def _cdiv(a, b):
    return -(-a // b)


def _round_up(x, m):
    return ((x + m - 1) // m) * m


def _vmem_limit_bytes():
    """Scoped VMEM to request: half of physical VMEM (32 MiB on v7x's
    64 MiB/TC, 64 MiB on v5e/v6e's 128 MiB).  Safe 32 MiB fallback."""
    try:
        cap = int(pltpu.get_tpu_info().vmem_capacity_bytes)
    except Exception:
        cap = 64 * 1024 * 1024
    return int(min(max(cap // 2, 32 * 1024 * 1024), 64 * 1024 * 1024))


def _choose_tn(n, bsz, per_col_bytes, resident_bytes, vmem_limit_bytes,
               target_steps=8):
    """Lane tile along N (multiple of 128, or the full N).

    Balances:
      * VMEM: per-column pipelined bytes + resident weights under ~75% of the
        scoped limit.
      * Pipelining / megacore: at least `target_steps` grid steps in total
        (>= 4 per TensorCore on v7x), even total preferred.
      * Tail balance: TN ~ round_up(ceil(N / k), 128) for the chosen step
        count k, so the trailing tile isn't nearly empty.
    """
    if n <= 128:
        return int(n)
    budget = int(vmem_limit_bytes * 0.75) - int(resident_bytes)
    tn_vmem = max(128, (max(budget, 0) // max(per_col_bytes, 1)) // 128 * 128)
    n128 = _cdiv(n, 128)
    steps_per_b = min(max(1, _cdiv(target_steps, bsz)), n128)
    tn_steps = _round_up(_cdiv(n, steps_per_b), 128)
    tn = min(tn_vmem, tn_steps)
    k = _cdiv(n, tn)
    if (bsz * k) % 2 == 1 and k < n128:        # prefer even total steps (2 TCs)
        k += 1
    tn = _round_up(_cdiv(n, k), 128)
    return int(n) if tn >= n else int(tn)


# ----------------------------------------------------------------------------
# Fused kernel: (Cout, Cin) @ (Cin, TN) + bias + (Leaky)ReLU, lane axis = N
# ----------------------------------------------------------------------------
def _make_conv1d_kernel(use_leaky):
    def kernel(x_ref, w_ref, b_ref, o_ref):
        x = x_ref[0]                                    # (Cin, TN)  lanes = points
        y = jnp.dot(w_ref[...], x,
                    preferred_element_type=jnp.float32)  # (Cout, TN) f32 acc
        y = y + b_ref[...]                              # (Cout, 1) f32 bias
        if use_leaky:
            y = jnp.where(y > 0, y, LEAKY_RATE * y)
        else:
            y = jnp.maximum(y, 0.0)
        o_ref[0] = y.astype(o_ref.dtype)
    return kernel


def conv1d_forward(x, weight, bias, *, use_leaky=True, compute_dtype=None,
                   out_dtype=None, tn=None):
    """Forward of the PyTorch `Conv1d` module (1x1 conv + bias + LeakyReLU).

    x:      (B, Cin, N)  channels-first (PyTorch layout).
    weight: (Cout, Cin) or (Cout, Cin, 1)  (PyTorch nn.Conv1d weight).
    bias:   (Cout,)
    Returns (B, Cout, N) in `out_dtype` (default: x.dtype).
    """
    if weight.ndim == 3:
        # TODO(synk): only the module's default kernel_size=1 / stride=1 /
        # padding=0 configuration (the one used throughout pointconv_util) is
        # implemented.
        assert weight.shape[-1] == 1, "only kernel_size=1 is supported"
        weight = weight[..., 0]
    cout, cin = weight.shape
    bsz, cin_x, n = x.shape
    assert cin_x == cin, f"channel mismatch: {cin_x} vs {cin}"

    # Compute dtype defaults to x's dtype: no standalone wrapper cast of the
    # activation (that would be an extra HBM pass unless XLA fuses it into
    # x's producer).  Feed bf16 activations end-to-end to get the bf16 MXU
    # path; accumulation is always f32.
    if compute_dtype is None:
        compute_dtype = x.dtype
    if out_dtype is None:
        out_dtype = x.dtype
    x_in = x if x.dtype == compute_dtype else x.astype(compute_dtype)
    w_in = weight.astype(compute_dtype)
    b_in = bias.reshape(cout, 1).astype(jnp.float32)

    vmem_limit = _vmem_limit_bytes()
    if tn is None:
        in_sz = jnp.dtype(compute_dtype).itemsize
        out_sz = jnp.dtype(out_dtype).itemsize
        per_col = 2 * (cin * in_sz + cout * out_sz)          # dbl-buffered x + y
        resident = 2 * (cout * cin * in_sz + cout * 4)       # weight + bias bufs
        tn = _choose_tn(n, bsz, per_col, resident, vmem_limit)
    grid = (bsz, pl.cdiv(n, tn))

    return pl.pallas_call(
        _make_conv1d_kernel(use_leaky),
        out_shape=jax.ShapeDtypeStruct((bsz, cout, n), out_dtype),
        grid=grid,
        in_specs=[
            pl.BlockSpec((1, cin, tn), lambda b, j: (b, 0, j)),
            pl.BlockSpec((cout, cin), lambda b, j: (0, 0)),
            pl.BlockSpec((cout, 1), lambda b, j: (0, 0)),
        ],
        out_specs=pl.BlockSpec((1, cout, tn), lambda b, j: (b, 0, j)),
        compiler_params=pltpu.CompilerParams(
            dimension_semantics=("parallel", "parallel"),
            vmem_limit_bytes=vmem_limit,
        ),
    )(x_in, w_in, b_in)


# ----------------------------------------------------------------------------
# Fused stack of consecutive 1x1 Conv1d layers (intermediates stay in VMEM)
# ----------------------------------------------------------------------------
def _make_conv1d_stack_kernel(use_leaky, num_layers, compute_dtype):
    def kernel(*refs):
        x_ref, o_ref = refs[0], refs[-1]
        h = x_ref[0]                                    # (C0, TN)
        for l in range(num_layers):
            w = refs[1 + 2 * l][...]
            b = refs[2 + 2 * l][...]
            y = jnp.dot(w, h, preferred_element_type=jnp.float32) + b
            if use_leaky:
                y = jnp.where(y > 0, y, LEAKY_RATE * y)
            else:
                y = jnp.maximum(y, 0.0)
            h = y if l == num_layers - 1 else y.astype(compute_dtype)
        o_ref[0] = h.astype(o_ref.dtype)
    return kernel


def conv1d_stack_forward(x, weights, biases, *, use_leaky=True,
                         compute_dtype=None, out_dtype=None, tn=None):
    """Fuses a chain of Conv1d modules (1x1 conv + bias + LeakyReLU each) into
    a single kernel: intermediate activations never round-trip HBM."""
    weights = [w[..., 0] if w.ndim == 3 else w for w in weights]
    chans = [weights[0].shape[1]] + [w.shape[0] for w in weights]
    bsz, cin_x, n = x.shape
    assert cin_x == chans[0]
    for l, w in enumerate(weights):
        assert w.shape[1] == chans[l], "layer channel mismatch"

    if compute_dtype is None:
        compute_dtype = x.dtype
    if out_dtype is None:
        out_dtype = x.dtype
    x_in = x if x.dtype == compute_dtype else x.astype(compute_dtype)
    ops = [x_in]
    for w, b in zip(weights, biases):
        ops.append(w.astype(compute_dtype))
        ops.append(b.reshape(-1, 1).astype(jnp.float32))

    vmem_limit = _vmem_limit_bytes()
    if tn is None:
        in_sz = jnp.dtype(compute_dtype).itemsize
        out_sz = jnp.dtype(out_dtype).itemsize
        # dbl-buffered x/out tiles + single-buffered f32 intermediates.
        per_col = 2 * (chans[0] * in_sz + chans[-1] * out_sz) + 4 * sum(chans[1:])
        resident = 2 * sum(w.size * in_sz + w.shape[0] * 4 for w in weights)
        tn = _choose_tn(n, bsz, per_col, resident, vmem_limit)
    grid = (bsz, pl.cdiv(n, tn))

    in_specs = [pl.BlockSpec((1, chans[0], tn), lambda b, j: (b, 0, j))]
    for w in weights:
        in_specs.append(pl.BlockSpec(w.shape, lambda b, j: (0, 0)))
        in_specs.append(pl.BlockSpec((w.shape[0], 1), lambda b, j: (0, 0)))

    return pl.pallas_call(
        _make_conv1d_stack_kernel(use_leaky, len(weights), compute_dtype),
        out_shape=jax.ShapeDtypeStruct((bsz, chans[-1], n), out_dtype),
        grid=grid,
        in_specs=in_specs,
        out_specs=pl.BlockSpec((1, chans[-1], tn), lambda b, j: (b, 0, j)),
        compiler_params=pltpu.CompilerParams(
            dimension_semantics=("parallel", "parallel"),
            vmem_limit_bytes=vmem_limit,
        ),
    )(*ops)


# ----------------------------------------------------------------------------
# Thin module-like wrapper mirroring the PyTorch class
# ----------------------------------------------------------------------------
class Conv1d:
    def __init__(self, in_channels, out_channels, kernel_size=1, stride=1,
                 padding=0, use_leaky=True, bn=False, *, key,
                 compute_dtype=None, out_dtype=None):
        # TODO(synk): bn=True (BatchNorm1d branch) is not implemented; the
        # module default is use_bn=False (Identity), which is what we support.
        assert kernel_size == 1 and stride == 1 and padding == 0 and not bn
        kw, kb = jax.random.split(key)
        bound = 1.0 / float(in_channels) ** 0.5         # PyTorch conv init scale
        self.weight = jax.random.uniform(kw, (out_channels, in_channels, 1),
                                         jnp.float32, -bound, bound)
        self.bias = jax.random.uniform(kb, (out_channels,), jnp.float32,
                                       -bound, bound)
        self.use_leaky = use_leaky
        self.compute_dtype = compute_dtype
        self.out_dtype = out_dtype

    def __call__(self, x):
        return conv1d_forward(x, self.weight, self.bias,
                              use_leaky=self.use_leaky,
                              compute_dtype=self.compute_dtype,
                              out_dtype=self.out_dtype)


# ----------------------------------------------------------------------------
# Pure-JAX reference (for correctness checking)
# ----------------------------------------------------------------------------
def conv1d_reference(x, weight, bias, use_leaky=True):
    if weight.ndim == 3:
        weight = weight[..., 0]
    x = x.astype(jnp.float32)
    y = jnp.einsum("oc,bcn->bon", weight, x) + bias[None, :, None]
    return jnp.where(y > 0, y, LEAKY_RATE * y) if use_leaky else jnp.maximum(y, 0.0)


# ----------------------------------------------------------------------------
if __name__ == "__main__":
    key = jax.random.PRNGKey(0)
    k1, k2, k3, k4, k5, k6, k7 = jax.random.split(key, 7)

    # --- Case 1: tiny shapes, single full-width block per batch -------------
    B, Cin, Cout, N = 2, 8, 32, 16
    x = jax.random.normal(k1, (B, Cin, N), jnp.float32)
    conv = Conv1d(Cin, Cout, key=k2)

    y = jax.jit(conv.__call__)(x)
    jax.block_until_ready(y)
    y_ref = conv1d_reference(x, conv.weight, conv.bias, use_leaky=True)
    assert y.shape == (B, Cout, N) and y.dtype == jnp.float32
    assert jnp.allclose(y, y_ref, atol=1e-5, rtol=1e-5), "fp32 small case mismatch"

    # ReLU (use_leaky=False) variant of the module.
    y_relu = conv1d_forward(x, conv.weight, conv.bias, use_leaky=False)
    jax.block_until_ready(y_relu)
    ref_relu = conv1d_reference(x, conv.weight, conv.bias, use_leaky=False)
    assert jnp.allclose(y_relu, ref_relu, atol=1e-5, rtol=1e-5), "relu case mismatch"

    # --- Case 2: N tiled into lane-dense 128-wide blocks + partial edge tile -
    B2, Cin2, Cout2, N2 = 2, 16, 64, 320          # 320 = 2.5 * 128
    x2 = jax.random.normal(k4, (B2, Cin2, N2), jnp.float32)
    w2 = jax.random.normal(k5, (Cout2, Cin2, 1), jnp.float32) * 0.1
    b2 = jax.random.normal(k6, (Cout2,), jnp.float32) * 0.1

    fwd2 = jax.jit(functools.partial(conv1d_forward, use_leaky=True))
    y2 = fwd2(x2, w2, b2)
    jax.block_until_ready(y2)
    y2_ref = conv1d_reference(x2, w2, b2, use_leaky=True)
    assert y2.shape == (B2, Cout2, N2)
    assert jnp.allclose(y2, y2_ref, atol=1e-5, rtol=1e-5), "fp32 tiled case mismatch"

    # --- Case 3: bf16 end-to-end (bf16 read + bf16 write, f32 MXU accum) -----
    x2_bf = x2.astype(jnp.bfloat16)
    fwd_bf16 = jax.jit(functools.partial(conv1d_forward, use_leaky=True))
    y3 = fwd_bf16(x2_bf, w2, b2)
    jax.block_until_ready(y3)
    assert y3.shape == (B2, Cout2, N2) and y3.dtype == jnp.bfloat16
    y3_ref = conv1d_reference(x2_bf, w2, b2, use_leaky=True)
    assert jnp.allclose(y3.astype(jnp.float32), y3_ref, atol=3e-2, rtol=3e-2), \
        "bf16 case mismatch"

    # --- Case 4: fused two-layer Conv1d stack (intermediate stays in VMEM) ---
    Cmid = 32
    w_mid = jax.random.normal(k3, (Cmid, Cin2, 1), jnp.float32) * 0.1
    b_mid = jax.random.normal(k7, (Cmid,), jnp.float32) * 0.1
    w_out = jax.random.normal(k5, (Cout2, Cmid, 1), jnp.float32) * 0.1
    b_out = jax.random.normal(k6, (Cout2,), jnp.float32) * 0.1

    fused = jax.jit(functools.partial(conv1d_stack_forward, use_leaky=True))
    y4 = fused(x2, [w_mid, w_out], [b_mid, b_out])
    jax.block_until_ready(y4)
    h_ref = conv1d_reference(x2, w_mid, b_mid, use_leaky=True)
    y4_ref = conv1d_reference(h_ref, w_out, b_out, use_leaky=True)
    assert y4.shape == (B2, Cout2, N2)
    assert jnp.allclose(y4, y4_ref, atol=1e-5, rtol=1e-5), "fused stack mismatch"

    assert bool(jnp.all(jnp.isfinite(y)) & jnp.all(jnp.isfinite(y2))
                & jnp.all(jnp.isfinite(y3.astype(jnp.float32)))
                & jnp.all(jnp.isfinite(y4)))
    print("KERNEL_OK")
</pallas_src>

<mosaic_0001>
module attributes {stable_mosaic.version = 11 : i64} {
  func.func @kernel(%arg0: i32, %arg1: i32, %arg2: memref<1x8x16xf32, #tpu.memory_space<vmem>>, %arg3: memref<32x8xf32, #tpu.memory_space<vmem>>, %arg4: memref<32x1xf32, #tpu.memory_space<vmem>>, %arg5: memref<1x32x16xf32, #tpu.memory_space<vmem>>) attributes {dimension_semantics = [#tpu.dimension_semantics<parallel>, #tpu.dimension_semantics<parallel>], iteration_bounds = array<i64: 2, 1>, scalar_prefetch = 0 : i64, scratch_operands = 0 : i64, tpu.core_type = #tpu.core_type<tc>, window_params = [{transform_indices = @transform_0, window_bounds = array<i64: 1, 8, 16>}, {pipeline_mode = #tpu.pipeline_mode<synchronous>, transform_indices = @transform_1, window_bounds = array<i64: 32, 8>}, {pipeline_mode = #tpu.pipeline_mode<synchronous>, transform_indices = @transform_2, window_bounds = array<i64: 32, 1>}, {transform_indices = @transform_3, window_bounds = array<i64: 1, 32, 16>}]} {
    %c0 = arith.constant 0 : index
    %c0_0 = arith.constant 0 : index
    %c0_1 = arith.constant 0 : index
    %0 = vector.load %arg2[%c0, %c0_0, %c0_1] : memref<1x8x16xf32, #tpu.memory_space<vmem>>, vector<1x8x16xf32>
    %1 = vector.shape_cast %0 : vector<1x8x16xf32> to vector<8x16xf32>
    %c0_2 = arith.constant 0 : index
    %c0_3 = arith.constant 0 : index
    %2 = vector.load %arg3[%c0_2, %c0_3] : memref<32x8xf32, #tpu.memory_space<vmem>>, vector<32x8xf32>
    %cst = arith.constant dense<0.000000e+00> : vector<32x16xf32>
    %3 = tpu.matmul %2, %1, %cst {dimension_numbers = #tpu.dot_dimension_numbers<[1], [0], [0], [1], [0, 0, 1, 1], [], []>} : vector<32x8xf32>, vector<8x16xf32>, vector<32x16xf32> -> vector<32x16xf32>
    %c0_4 = arith.constant 0 : index
    %c0_5 = arith.constant 0 : index
    %4 = vector.load %arg4[%c0_4, %c0_5] : memref<32x1xf32, #tpu.memory_space<vmem>>, vector<32x1xf32>
    %5 = vector.broadcast %4 : vector<32x1xf32> to vector<32x16xf32>
    %6 = arith.addf %3, %5 : vector<32x16xf32>
    %cst_6 = arith.constant 0.000000e+00 : f32
    %7 = vector.broadcast %cst_6 : f32 to vector<32x16xf32>
    %8 = arith.cmpf ogt, %6, %7 : vector<32x16xf32>
    %cst_7 = arith.constant 1.000000e-01 : f32
    %9 = vector.broadcast %cst_7 : f32 to vector<32x16xf32>
    %10 = arith.mulf %9, %6 : vector<32x16xf32>
    %11 = arith.select %8, %6, %10 : vector<32x16xi1>, vector<32x16xf32>
    %c0_8 = arith.constant 0 : index
    %c0_9 = arith.constant 0 : index
    %c0_10 = arith.constant 0 : index
    %12 = vector.load %arg5[%c0_8, %c0_9, %c0_10] : memref<1x32x16xf32, #tpu.memory_space<vmem>>, vector<1x32x16xf32>
    %13 = vector.shape_cast %12 : vector<1x32x16xf32> to vector<32x16xf32>
    %14 = vector.shape_cast %11 : vector<32x16xf32> to vector<1x32x16xf32>
    tpu.vector_store %arg5[%c0_8, %c0_9, %c0_10], %14 {strides = array<i32>} : memref<1x32x16xf32, #tpu.memory_space<vmem>>, vector<1x32x16xf32>,
    return
  }
  func.func @transform_0(%arg0: i32, %arg1: i32) -> (i32, i32, i32) {
    %c0_i32 = arith.constant 0 : i32
    %c0_i32_0 = arith.constant 0 : i32
    return %arg0, %c0_i32, %arg1 : i32, i32, i32
  }
  func.func @transform_1(%arg0: i32, %arg1: i32) -> (i32, i32) {
    %c0_i32 = arith.constant 0 : i32
    %c0_i32_0 = arith.constant 0 : i32
    %c0_i32_1 = arith.constant 0 : i32
    return %c0_i32, %c0_i32_0 : i32, i32
  }
  func.func @transform_2(%arg0: i32, %arg1: i32) -> (i32, i32) {
    %c0_i32 = arith.constant 0 : i32
    %c0_i32_0 = arith.constant 0 : i32
    %c0_i32_1 = arith.constant 0 : i32
    return %c0_i32, %c0_i32_0 : i32, i32
  }
  func.func @transform_3(%arg0: i32, %arg1: i32) -> (i32, i32, i32) {
    %c0_i32 = arith.constant 0 : i32
    %c0_i32_0 = arith.constant 0 : i32
    return %arg0, %c0_i32, %arg1 : i32, i32, i32
  }
}

</mosaic_0001>

<llo_original>
// kernel: a_call__.1
$region0: #{a_call__.1}
  #allocation0 [shape = 'u32[]', space=smem, size = 0x4, offset = 0x4, fixed_abs, tag = 'smem constant byte address 0x4 - core index']
  #allocation1 [shape = 'u32[144,128]{1,0:T(1,128)}', space=vmem, size = 0x12000, scoped, tag = 'internal scratch']
  %s0 = inlined_call_operand.hbm [shape: f32[2,8,16], index: 0, kind: input, shape index: {}]
  %s1 = inlined_call_operand.hbm [shape: f32[32,8], index: 1, kind: input, shape index: {}]
  %s2 = inlined_call_operand.hbm [shape: f32[32,1], index: 2, kind: input, shape index: {}]
  %s3 = inlined_call_operand.vmem [shape: f32[2,32,16], index: 3, kind: output, shape index: {}]
  %s4 = sld [smem:[#allocation0]]
  $region57: #{a_call__.1} parent=0
    _
  %s6 = ssub.s32 1, %s4
  %s7 = scalar_select 0, %s6, %s4
  $region1: #{a_call__.1} parent=0
    #allocation2 [shape = 'u8[8192]{0}', space=vmem, size = 0x2000, scoped, tag = 'input window, operand 0']
    #allocation3 [shape = 's32[2]{0}', space=sflag, size = 0x8, scoped, tag = 'scoped memory for a_call__.1']
    #allocation4 [shape = 'u8[16384]{0}', space=vmem, size = 0x4000, scoped, tag = 'input window, operand 1, single buffered']
    #allocation5 [shape = 's32[1]{0}', space=sflag, size = 0x4, scoped, tag = 'scoped memory for a_call__.1']
    #allocation6 [shape = 'u8[16384]{0}', space=vmem, size = 0x4000, scoped, tag = 'input window, operand 2, single buffered']
    %8 = vsyncpa [#allocation3], 0
    %s9 = scalar_lea.sflag [#allocation3], 1
    %10 = vsyncpa %s9, 0
    %11 = vsyncpa [#allocation5], 0
    loop: start=0, step=1, limit=4
    $region2: #{a_call__.1} parent=1 // loop_pre_header
      _
    $region3: #{a_call__.1} parent=1 // loop_header
      %s13 = sphi 0, %s17
      %p14 = scmp.ge.s32.totalorder %s13, 4
      %s20 = sphi 0, %s32
      %s21 = sphi 0, %s28
      %s22 = sphi 0, %s20
      %s23 = sphi 0, %s21
      %s24 = sphi 0, %s22
      %s25 = sphi 0, %s23
      %s37 = sphi 0, %s39
      %s40 = sphi 0, %s37
      %s41 = sphi 0, %s40
      %s57 = sphi 0, %s41
      %s61 = sphi 0, %s61
      %s63 = sphi 0, %s61
      %s64 = sphi 0, %s63
      %s78 = sphi 0, %s64
      %s82 = sphi 0, %s82
      %s84 = sphi 0, %s82
      %s85 = sphi 0, %s84
      %s99 = sphi 0, %s85
      %s107 = sphi 0, %s109
      %s110 = sphi 0, %s107
      %s111 = sphi 0, %s110
      %s127 = sphi 0, %s111
    $region4: #{a_call__.1} parent=1 // loop_header_branch
      %16 = sbr.rel (%p14) target = $region8
    $region5: #{a_call__.1} parent=1 // loop_body
      %s18 = ssub.s32 %s13, 1
      %s19 = ssub.s32 %s13, 2
      %s26 = sadd.s32 1, %s21
      %p27 = scmp.ge.s32.totalorder %s26, 1
      %s28 = scalar_select %p27, 0, %s26
      %s29 = sadd.s32 1, %s20
      %s30 = scalar_select %p27, %s29, %s20
      %p31 = scmp.ge.s32.totalorder %s30, 2
      %s32 = scalar_select %p31, 0, %s30
      %s33 = ssub.s32 %s20, %s32
      %s34 = ssub.s32 %s21, %s28
      %s35 = sor.u32 %s33, %s34
      %p36 = scmp.eq.s32.totalorder %s35, 0
      %s38 = sadd.s32 %s37, 1
      %s39 = scalar_select %p36, %s37, %s38
      %p42 = pneg %p36
      %p43 = scmp.eq.s32.totalorder %s13, 1
      %p44 = por %p42, %p43
      %p45 = scmp.ne.s32.totalorder %s37, %s40
      %p46 = scmp.eq.s32.totalorder %s13, 0
      %p47 = por %p45, %p46
      %p48 = scmp.ne.s32.totalorder %s37, %s40
      %p49 = scmp.eq.s32.totalorder %s18, 1
      %p50 = por %p48, %p49
      %p51 = scmp.ne.s32.totalorder %s40, %s41
      %p52 = scmp.eq.s32.totalorder %s18, 0
      %p53 = por %p51, %p52
      %p54 = scmp.ne.s32.totalorder %s40, %s41
      %p55 = scmp.eq.s32.totalorder %s19, 1
      %p56 = por %p54, %p55
      %p58 = scmp.ne.s32.totalorder %s41, %s57
      %p59 = scmp.eq.s32.totalorder %s19, 0
      %p60 = por %p58, %p59
      %s62 = sadd.s32 %s61, 1
      %p65 = scmp.eq.s32.totalorder %s13, 1
      %p66 = scmp.ne.s32.totalorder %s61, %s63
      %p67 = scmp.eq.s32.totalorder %s13, 0
      %p68 = por %p66, %p67
      %p69 = scmp.ne.s32.totalorder %s61, %s63
      %p70 = scmp.eq.s32.totalorder %s18, 1
      %p71 = por %p69, %p70
      %p72 = scmp.ne.s32.totalorder %s63, %s64
      %p73 = scmp.eq.s32.totalorder %s18, 0
      %p74 = por %p72, %p73
      %p75 = scmp.ne.s32.totalorder %s63, %s64
      %p76 = scmp.eq.s32.totalorder %s19, 1
      %p77 = por %p75, %p76
      %p79 = scmp.ne.s32.totalorder %s64, %s78
      %p80 = scmp.eq.s32.totalorder %s19, 0
      %p81 = por %p79, %p80
      %s83 = sadd.s32 %s82, 1
      %p86 = scmp.eq.s32.totalorder %s13, 1
      %p87 = scmp.ne.s32.totalorder %s82, %s84
      %p88 = scmp.eq.s32.totalorder %s13, 0
      %p89 = por %p87, %p88
      %p90 = scmp.ne.s32.totalorder %s82, %s84
      %p91 = scmp.eq.s32.totalorder %s18, 1
      %p92 = por %p90, %p91
      %p93 = scmp.ne.s32.totalorder %s84, %s85
      %p94 = scmp.eq.s32.totalorder %s18, 0
      %p95 = por %p93, %p94
      %p96 = scmp.ne.s32.totalorder %s84, %s85
      %p97 = scmp.eq.s32.totalorder %s19, 1
      %p98 = por %p96, %p97
      %p100 = scmp.ne.s32.totalorder %s85, %s99
      %p101 = scmp.eq.s32.totalorder %s19, 0
      %p102 = por %p100, %p101
      %s103 = ssub.s32 %s20, %s32
      %s104 = ssub.s32 %s21, %s28
      %s105 = sor.u32 %s103, %s104
      %p106 = scmp.eq.s32.totalorder %s105, 0
      %s108 = sadd.s32 %s107, 1
      %s109 = scalar_select %p106, %s107, %s108
      %p112 = pneg %p106
      %p113 = scmp.eq.s32.totalorder %s13, 1
      %p114 = por %p112, %p113
      %p115 = scmp.ne.s32.totalorder %s107, %s110
      %p116 = scmp.eq.s32.totalorder %s13, 0
      %p117 = por %p115, %p116
      %p118 = scmp.ne.s32.totalorder %s107, %s110
      %p119 = scmp.eq.s32.totalorder %s18, 1
      %p120 = por %p118, %p119
      %p121 = scmp.ne.s32.totalorder %s110, %s111
      %p122 = scmp.eq.s32.totalorder %s18, 0
      %p123 = por %p121, %p122
      %p124 = scmp.ne.s32.totalorder %s110, %s111
      %p125 = scmp.eq.s32.totalorder %s19, 1
      %p126 = por %p124, %p125
      %p128 = scmp.ne.s32.totalorder %s111, %s127
      %p129 = scmp.eq.s32.totalorder %s19, 0
      %p130 = por %p128, %p129
      %p131 = scmp.le.s32.totalorder 1, %s13
      %p132 = scmp.lt.s32.totalorder %s13, 3
      %p133 = pnand %p131, %p132
      %p134 = pneg %p133
      // Predicated region
      $region9: #{a_call__.1} parent=5 // pred_check
        _
      $region10: #{a_call__.1} parent=5 // pred_check_branch
        %136 = sbr.rel (%p133) target = $region12
      $region11: #{a_call__.1} parent=5 // pred_region
        %s137 = ssub.s32 %s13, 1
        // Predicated region
        $region13: #{a_call__.1} parent=11 // pred_check
          %p138 = pneg %p74
        $region14: #{a_call__.1} parent=11 // pred_check_branch
          %140 = sbr.rel (%p138) target = $region16
        $region15: #{a_call__.1} parent=11 // pred_region
          %s142 = ssub.s32 512, 512
          %143 = vsyncadd [#allocation5], %s142
          %s144 = sshll.u32 [#allocation4], 4
          %s145 = int_to_ptr.vmem [resolvable:$true] %s144
          %150 = dma.hbm_to_vmem [thread:$0]  %s1, 512, %s145, [#allocation5], 128, 128, 8
        $region16: #{a_call__.1} parent=11 // pred_fallthru
          _
        // Predicated region
        $region17: #{a_call__.1} parent=11 // pred_check
          %p151 = pneg %p95
        $region18: #{a_call__.1} parent=11 // pred_check_branch
          %153 = sbr.rel (%p151) target = $region20
        $region19: #{a_call__.1} parent=11 // pred_region
          %s155 = ssub.s32 512, 512
          %156 = vsyncadd [#allocation5], %s155
          %s157 = sshll.u32 [#allocation6], 4
          %s158 = int_to_ptr.vmem [resolvable:$true] %s157
          %163 = dma.hbm_to_vmem [thread:$0]  %s2, 512, %s158, [#allocation5], 128, 128, 8
        $region20: #{a_call__.1} parent=11 // pred_fallthru
          _
      $region12: #{a_call__.1} parent=5 // pred_fallthru
        _
      %p164 = scmp.lt.s32.totalorder %s13, 2
      // Predicated region
      $region21: #{a_call__.1} parent=5 // pred_check
        %p165 = pneg %p164
      $region22: #{a_call__.1} parent=5 // pred_check_branch
        %167 = sbr.rel (%p165) target = $region24
      $region23: #{a_call__.1} parent=5 // pred_region
        // Predicated region
        $region25: #{a_call__.1} parent=23 // pred_check
          %p168 = pneg %p47
        $region26: #{a_call__.1} parent=23 // pred_check_branch
          %170 = sbr.rel (%p168) target = $region28
        $region27: #{a_call__.1} parent=23 // pred_region
          %s171 = sand.u32 %s37, 1
          %s172 = scalar_lea.sflag [#allocation3], %s171
          %s173 = sand.u32 %s37, 1
          %s174 = smul.addr %s173, 8
          %s175 = scalar_lea.vmem [#allocation2], %s174
          %s177 = ssub.s32 128, 128
          %178 = vsyncadd %s172, %s177
          %s179 = sadd.s32 %s21, %s20
          %s180 = smul.addr %s179, 128
          %s181 = scalar_lea.hbm %s0, %s180
          %s183 = sshll.u32 %s175, 4
          %s184 = int_to_ptr.vmem [resolvable:$true] %s183
          %186 = dma.hbm_to_vmem [thread:$0]  %s181, 128, %s184, %s172
        $region28: #{a_call__.1} parent=23 // pred_fallthru
          _
      $region24: #{a_call__.1} parent=5 // pred_fallthru
        _
      %p187 = scmp.le.s32.totalorder 1, %s13
      %p188 = scmp.lt.s32.totalorder %s13, 3
      %p189 = pnand %p187, %p188
      %p190 = pneg %p189
      // Predicated region
      $region29: #{a_call__.1} parent=5 // pred_check
        _
      $region30: #{a_call__.1} parent=5 // pred_check_branch
        %192 = sbr.rel (%p189) target = $region32
      $region31: #{a_call__.1} parent=5 // pred_region
        %s193 = ssub.s32 %s13, 1
        %s194 = sand.u32 %s40, 1
        %s195 = scalar_lea.sflag [#allocation3], %s194
        %s196 = sand.u32 %s40, 1
        %s197 = smul.addr %s196, 8
        %s198 = scalar_lea.vmem [#allocation2], %s197
        // Predicated region
        $region33: #{a_call__.1} parent=31 // pred_check
          %p199 = pneg %p53
        $region34: #{a_call__.1} parent=31 // pred_check_branch
          %201 = sbr.rel (%p199) target = $region36
        $region35: #{a_call__.1} parent=31 // pred_region
          %202 = dma.done %s195, 128
        $region36: #{a_call__.1} parent=31 // pred_fallthru
          _
        // Predicated region
        $region37: #{a_call__.1} parent=31 // pred_check
          %p203 = pneg %p74
        $region38: #{a_call__.1} parent=31 // pred_check_branch
          %205 = sbr.rel (%p203) target = $region40
        $region39: #{a_call__.1} parent=31 // pred_region
          %206 = dma.done [#allocation5], 512
        $region40: #{a_call__.1} parent=31 // pred_fallthru
          _
        // Predicated region
        $region41: #{a_call__.1} parent=31 // pred_check
          %p207 = pneg %p95
        $region42: #{a_call__.1} parent=31 // pred_check_branch
          %209 = sbr.rel (%p207) target = $region44
        $region43: #{a_call__.1} parent=31 // pred_region
          %210 = dma.done [#allocation5], 512
        $region44: #{a_call__.1} parent=31 // pred_fallthru
          _
        %s211 = sand.u32 %s40, 1
        %s212 = scalar_lea.sflag [#allocation3], %s211
        %s213 = sand.u32 %s40, 1
        %s214 = smul.addr %s213, 8
        %s215 = scalar_lea.vmem [#allocation2], %s214
        %p216 = pneg %p53
        %p217 = pneg %p50
        %p218 = pneg %p74
        %p219 = pneg %p71
        %p220 = pneg %p95
        %p221 = pneg %p92
        %p222 = pneg %p123
        %p223 = pneg %p120
        %p224 = scmp.lt.s32.totalorder %s22, 1
        %s225 = scalar_select %p224, %s22, 1
        %p226 = scmp.lt.s32.totalorder %s23, 0
        %s227 = scalar_select %p226, %s23, 0
        %s228 = smul.addr %s225, 4
        %s229 = sadd.s32 %s227, %s228
        %s230 = smul.addr %s229, 8
        %s231 = scalar_lea.vmem %s3, %s230
        %p232 = scmp.lt.s32.totalorder %s22, 1
        %s233 = scalar_select %p232, %s22, 1
        %p234 = scmp.lt.s32.totalorder %s23, 0
        %s235 = scalar_select %p234, %s23, 0
        %s236 = smul.addr %s233, 4
        %s237 = sadd.s32 %s235, %s236
        %s238 = smul.addr %s237, 8
        %s239 = scalar_lea.vmem %s3, %s238
        %v240 = vld [vmem:[%s198] sm:$0xff]
        %v241 = vld [vmem:[#allocation4] sm:$0xff]
        %v242 = vld [vmem:[#allocation4 + $0x8] sm:$0xff]
        %v243 = vld [vmem:[#allocation4 + $0x10] sm:$0xff]
        %v244 = vld [vmem:[#allocation4 + $0x18] sm:$0xff]
        %v245 = vld [vmem:[#allocation6] sm:$0xff]
        %v246 = vld [vmem:[#allocation6 + $0x8] sm:$0xff]
        %v247 = vld [vmem:[#allocation6 + $0x10] sm:$0xff]
        %v248 = vld [vmem:[#allocation6 + $0x18] sm:$0xff]
        %250 = vset.pattern.permute.xlu0 0
        %251 = vperm.xlu0 %250, %v245
        %v252 = vpop.permute.xlu0 %251
        %255 = vset.pattern.permute.xlu0 0
        %256 = vperm.xlu0 %255, %v246
        %v257 = vpop.permute.xlu0 %256
        %260 = vset.pattern.permute.xlu0 0
        %261 = vperm.xlu0 %260, %v247
        %v262 = vpop.permute.xlu0 %261
        %265 = vset.pattern.permute.xlu0 0
        %266 = vperm.xlu0 %265, %v248
        %v267 = vpop.permute.xlu0 %266
        %vm269 = vcmask 64512
        %v271 = vsel %vm269, %v241, 0
        %v274 = vsel %vm269, %v242, 0
        %v277 = vsel %vm269, %v243, 0
        %v280 = vsel %vm269, %v244, 0
        %282 = vmatprep.subr.mxu0 0.0
        %283 = vmatpush1.msra.mxu0 %v240
        %284 = vmatprep.subr.mxu0 0.0
        %285 = vmatpush1.msra.mxu0 0.0
        %286 = vmatprep.subr.mxu0 0.0
        %287 = vmatpush1.msra.mxu0 0.0
        %288 = vmatprep.subr.mxu0 0.0
        %289 = vmatpush1.msra.mxu0 0.0
        %290 = vmatprep.subr.mxu0 0.0
        %291 = vmatpush1.msra.mxu0 0.0
        %292 = vmatprep.subr.mxu0 0.0
        %293 = vmatpush1.msra.mxu0 0.0
        %294 = vmatprep.subr.mxu0 0.0
        %295 = vmatpush1.msra.mxu0 0.0
        %296 = vmatprep.subr.mxu0 0.0
        %297 = vmatpush1.msra.mxu0 0.0
        %298 = vmatprep.subr.mxu0 0.0
        %299 = vmatpush1.msra.mxu0 0.0
        %300 = vmatprep.subr.mxu0 0.0
        %301 = vmatpush1.msra.mxu0 0.0
        %302 = vmatprep.subr.mxu0 0.0
        %303 = vmatpush1.msra.mxu0 0.0
        %304 = vmatprep.subr.mxu0 0.0
        %305 = vmatpush1.msra.mxu0 0.0
        %306 = vmatprep.subr.mxu0 0.0
        %307 = vmatpush1.msra.mxu0 0.0
        %308 = vmatprep.subr.mxu0 0.0
        %309 = vmatpush1.msra.mxu0 0.0
        %310 = vmatprep.subr.mxu0 0.0
        %311 = vmatpush1.msra.mxu0 0.0
        %312 = vmatprep.subr.mxu0 0.0
        %313 = vmatpush1.msra.mxu0 0.0
        %314 = vmatprep.subr.mxu0 0.0
        %315 = vmatpush1.msra.mxu0 0.0
        %316 = vmatprep.subr.mxu0 0.0
        %317 = vmatpush1.msra.mxu0 0.0
        %318 = vmatprep.subr.mxu0 0.0
        %319 = vmatpush1.msra.mxu0 0.0
        %320 = vmatprep.subr.mxu0 0.0
        %321 = vmatpush1.msra.mxu0 0.0
        %322 = vmatprep.subr.mxu0 0.0
        %323 = vmatpush1.msra.mxu0 0.0
        %324 = vmatprep.subr.mxu0 0.0
        %325 = vmatpush1.msra.mxu0 0.0
        %326 = vmatprep.subr.mxu0 0.0
        %327 = vmatpush1.msra.mxu0 0.0
        %328 = vmatprep.subr.mxu0 0.0
        %329 = vmatpush1.msra.mxu0 0.0
        %330 = vmatprep.subr.mxu0 0.0
        %331 = vmatpush1.msra.mxu0 0.0
        %332 = vmatprep.subr.mxu0 0.0
        %333 = vmatpush1.msra.mxu0 0.0
        %334 = vmatprep.subr.mxu0 0.0
        %335 = vmatpush1.msra.mxu0 0.0
        %336 = vmatprep.subr.mxu0 0.0
        %337 = vmatpush1.msra.mxu0 0.0
        %338 = vmatprep.subr.mxu0 0.0
        %339 = vmatpush1.msra.mxu0 0.0
        %340 = vmatprep.subr.mxu0 0.0
        %341 = vmatpush1.msra.mxu0 0.0
        %342 = vmatprep.subr.mxu0 0.0
        %343 = vmatpush1.msra.mxu0 0.0
        %344 = vmatprep.subr.mxu0 0.0
        %345 = vmatpush1.msra.mxu0 0.0
        %346 = vmatprep.mubr.f32.mxu0 0.0
        %347 = vmatmul.mubr.f32.gmra.mrb[0].mxu0 %v271
        %v348 = vpop.f32.mrb[0].mxu0
        %v349 = vadd.f32 %v252, %v348
        %v350 = vpop.f32.mrb[0].mxu0
        %351 = vmatprep.mubr.f32.mxu0 0.0
        %352 = vmatmul.mubr.f32.gmra.mrb[0].mxu0 %v274
        %v353 = vpop.f32.mrb[0].mxu0
        %v354 = vadd.f32 %v257, %v353
        %v355 = vpop.f32.mrb[0].mxu0
        %356 = vmatprep.mubr.f32.mxu0 0.0
        %357 = vmatmul.mubr.f32.gmra.mrb[0].mxu0 %v277
        %v358 = vpop.f32.mrb[0].mxu0
        %v359 = vadd.f32 %v262, %v358
        %v360 = vpop.f32.mrb[0].mxu0
        %361 = vmatprep.mubr.f32.mxu0 0.0
        %362 = vmatmul.mubr.f32.gmra.mrb[0].mxu0 %v280
        %v363 = vpop.f32.mrb[0].mxu0
        %v364 = vadd.f32 %v267, %v363
        %v365 = vpop.f32.mrb[0].mxu0
        %366 = vdwg.mxu0
        %vm367 = vcmp.gt.f32.partialorder %v349, 0.0
        %vm368 = vcmp.gt.f32.partialorder %v354, 0.0
        %vm369 = vcmp.gt.f32.partialorder %v359, 0.0
        %vm370 = vcmp.gt.f32.partialorder %v364, 0.0
        %v371 = vmul.f32 %v349, 0.1
        %v372 = vmul.f32 %v354, 0.1
        %v373 = vmul.f32 %v359, 0.1
        %v374 = vmul.f32 %v364, 0.1
        %v375 = vsel %vm367, %v349, %v371
        %v376 = vsel %vm368, %v354, %v372
        %v377 = vsel %vm369, %v359, %v373
        %v378 = vsel %vm370, %v364, %v374
        %vm379 = vcmask 130048
        %380 = vst.msk [vmem:[%s239] sm:$0xff] %vm379, %v375
        %381 = vst.msk [vmem:[%s239 + $0x8] sm:$0xff] %vm379, %v376
        %382 = vst.msk [vmem:[%s239 + $0x10] sm:$0xff] %vm379, %v377
        %383 = vst.msk [vmem:[%s239 + $0x18] sm:$0xff] %vm379, %v378
        %p384 = scmp.lt.s32.totalorder %s22, 1
        %s385 = scalar_select %p384, %s22, 1
        %p386 = scmp.lt.s32.totalorder %s23, 0
        %s387 = scalar_select %p386, %s23, 0
        %s388 = smul.addr %s385, 4
        %s389 = sadd.s32 %s387, %s388
        %s390 = smul.addr %s389, 8
        %s391 = scalar_lea.vmem %s3, %s390
        // Predicated region
        $region45: #{a_call__.1} parent=31 // pred_check
          %p392 = pneg %p120
        $region46: #{a_call__.1} parent=31 // pred_check_branch
          %394 = sbr.rel (%p392) target = $region48
        $region47: #{a_call__.1} parent=31 // pred_region
          _
        $region48: #{a_call__.1} parent=31 // pred_fallthru
          _
      $region32: #{a_call__.1} parent=5 // pred_fallthru
        _
      %p395 = scmp.le.s32.totalorder 2, %s13
      // Predicated region
      $region49: #{a_call__.1} parent=5 // pred_check
        %p396 = pneg %p395
      $region50: #{a_call__.1} parent=5 // pred_check_branch
        %398 = sbr.rel (%p396) target = $region52
      $region51: #{a_call__.1} parent=5 // pred_region
        %s399 = ssub.s32 %s13, 2
        // Predicated region
        $region53: #{a_call__.1} parent=51 // pred_check
          %p400 = pneg %p126
        $region54: #{a_call__.1} parent=51 // pred_check_branch
          %402 = sbr.rel (%p400) target = $region56
        $region55: #{a_call__.1} parent=51 // pred_region
          %p403 = scmp.lt.s32.totalorder %s24, 1
          %s404 = scalar_select %p403, %s24, 1
          %p405 = scmp.lt.s32.totalorder %s25, 0
          %s406 = scalar_select %p405, %s25, 0
          %s407 = smul.addr %s404, 4
          %s408 = sadd.s32 %s406, %s407
          %s409 = smul.addr %s408, 8
          %s410 = scalar_lea.vmem %s3, %s409
        $region56: #{a_call__.1} parent=51 // pred_fallthru
          _
      $region52: #{a_call__.1} parent=5 // pred_fallthru
        _
    $region6: #{a_call__.1} parent=1 // loop_footer
      %s17 = sadd.s32 1, %s13
    $region7: #{a_call__.1} parent=1 // loop_footer_branch
      %12 = sbr.rel target = $region3
    $region8: #{a_call__.1} parent=1 // loop_exit
      _
    %411 = vsyncpa [#allocation3], 1
    %s412 = scalar_lea.sflag [#allocation3], 1
    %413 = vsyncpa %s412, 1
    %414 = vsyncpa [#allocation5], 1

</llo_original>
